<compile_context>
chip_gen: v6e
topology: v6e:2x2x1
jax: 0.10.0
libtpu: 0.0.40
codegen_flags: <defaults>
</compile_context>

<pallas_src>
import jax
import jax.numpy as jnp
from jax.experimental import pallas as pl
from jax.experimental.pallas import tpu as pltpu


def _attention_kernel(x_ref, wseg_ref, bcast_ref, o_ref):
    x = x_ref[...]                                  # (B, tm, L)   L = p*H lane-dense
    wseg = wseg_ref[...]                            # (L, P)       block-diag attention
    bcast = bcast_ref[...]                          # (P, L)       0/1 broadcast matrix
    B, tm, L = x.shape
    P = wseg.shape[-1]

    xf = x.astype(jnp.float32)
    x2 = xf.reshape(B * tm, L)                      # merge leading dims (tile-aligned)

    # score[b, m] for each of the P packed m-positions per row — idle-MXU matmul.
    scores = jnp.dot(x2, wseg,
                     preferred_element_type=jnp.float32).reshape(B, tm, P)

    # Numerically-stable softmax over axis 0 (B).  The full B extent lives in every
    # block (B is never tiled by the grid), so the max / sum over B are exact.
    m_max = jnp.max(scores, axis=0, keepdims=True)  # (1, tm, P)
    e = jnp.exp(scores - m_max)                     # (B, tm, P)
    denom = jnp.sum(e, axis=0, keepdims=True)       # (1, tm, P)
    probs = e / denom                               # exact divide (HBM-bound → free)

    # Broadcast probs back across the H lanes of each packed m-position (0/1 MXU matmul).
    probs_l = jnp.dot(probs.reshape(B * tm, P), bcast,
                      preferred_element_type=jnp.float32).reshape(B, tm, L)

    # Weighted sum over B — lane-dense, unmasked store when L == 128.
    o_ref[...] = jnp.sum(xf * probs_l, axis=0).astype(o_ref.dtype)   # (tm, L)


def attention_forward(x_in, attention, *, block_bytes=8 * 1024 * 1024):
    """x_in: (B, S1, S2, H), attention: (H, 1) -> (S1, S2, H)."""
    B, S1, S2, H = x_in.shape
    M = S1 * S2
    dtype = x_in.dtype
    itemsize = jnp.dtype(dtype).itemsize

    # Lane-dense packing: group p consecutive m-positions per 128-lane row when legal.
    if H <= 128 and 128 % H == 0 and M % (128 // H) == 0:
        p = 128 // H
    else:
        p = 1                                        # fallback layout (still correct)
    L = p * H
    M_p = M // p

    x2 = x_in.reshape(B, M_p, L)                     # row-major reshape, no data movement

    a = attention.reshape(H, 1).astype(jnp.float32)
    # (L, p) block-diagonal copy of the attention vector; (p, L) 0/1 broadcast matrix.
    wseg = jnp.kron(jnp.eye(p, dtype=jnp.float32), a)
    bcast = jnp.kron(jnp.eye(p, dtype=jnp.float32), jnp.ones((1, H), jnp.float32))

    # Sublane granularity depends on dtype (f32: 8, bf16: 16, int8/fp8: 32).
    min_sub = {4: 8, 2: 16, 1: 32}.get(itemsize, 8)

    # Byte-budget the M tile (~8 MiB of streamed x per block).  Double-buffered x +
    # double-buffered output stays well under the 48 MiB VMEM limit requested below
    # (safe on v7x's 64 MiB physical VMEM as well as v5e/v6e).
    rows_budget = max(min_sub, block_bytes // max(1, B * L * itemsize))
    if rows_budget >= M_p:
        tm = M_p                                     # single resident block, grid=(1,)
        grid_m = 1
    else:
        grid_m = pl.cdiv(M_p, rows_budget)
        grid_m = 2 * pl.cdiv(grid_m, 2)              # even #steps → v7x megacore splits evenly
        tm = pl.cdiv(M_p, grid_m)
        tm = ((tm + min_sub - 1) // min_sub) * min_sub
        grid_m = pl.cdiv(M_p, tm)
        # No jnp.pad / output slice: a ragged tail block is handled by Pallas's
        # implicit masking (padded m-rows are independent — softmax is over B only —
        # and the masked store never writes them).

    cost = pl.CostEstimate(
        flops=2 * B * M * H                 # score matmul
              + 2 * B * M_p * p * L         # prob -> lane broadcast matmul
              + 2 * B * M * H,              # weighted sum (mul + add)
        transcendentals=B * M,              # exp
        bytes_accessed=(B * M_p * L + M_p * L + L * p + p * L) * itemsize,
    )

    out = pl.pallas_call(
        _attention_kernel,
        out_shape=jax.ShapeDtypeStruct((M_p, L), dtype),
        grid_spec=pltpu.PrefetchScalarGridSpec(
            num_scalar_prefetch=0,
            grid=(grid_m,),
            in_specs=[
                pl.BlockSpec((B, tm, L), lambda i: (0, i, 0)),
                pl.BlockSpec((L, p), lambda i: (0, 0)),   # constant block → stays resident
                pl.BlockSpec((p, L), lambda i: (0, 0)),   # constant block → stays resident
            ],
            out_specs=pl.BlockSpec((tm, L), lambda i: (i, 0)),
        ),
        compiler_params=pltpu.CompilerParams(
            dimension_semantics=("parallel",),            # shard the M loop across TCs (v7x)
            vmem_limit_bytes=48 * 1024 * 1024,
        ),
        cost_estimate=cost,
    )(x2, wseg, bcast)

    return out.reshape(S1, S2, H)


def _reference(x_in, attention):
    # pure-JAX mirror of the PyTorch Attention.forward
    scores = jnp.squeeze(jnp.matmul(x_in, attention))                # (B, S1, S2)
    probs = jax.nn.softmax(scores, axis=0)[..., None]                # (B, S1, S2, 1)
    return jnp.sum(x_in * probs, axis=0)                             # (S1, S2, H)


if __name__ == "__main__":
    key = jax.random.PRNGKey(0)
    # RNNModel attention input: cat(rnn_output, encoder_output) -> B=2, then
    # (seq_len, batch, nhid) = (S1, S2, H) with H == attention_size == nhid.
    B, S1, S2, H = 2, 16, 8, 32

    kx, kw = jax.random.split(key)
    x = jax.random.normal(kx, (B, S1, S2, H), dtype=jnp.float32)

    # deterministic xavier_normal_ init for attention: shape (H, 1),
    # std = sqrt(2 / (fan_in + fan_out)) = sqrt(2 / (H + 1))
    std = (2.0 / (H + 1)) ** 0.5
    attention = std * jax.random.normal(kw, (H, 1), dtype=jnp.float32)

    ref = _reference(x, attention)

    # Default path: whole x resident, grid=(1,), lane-dense packed (p=4 -> 128 lanes).
    out = jax.block_until_ready(attention_forward(x, attention))
    assert out.shape == (S1, S2, H)
    assert jnp.allclose(out, ref, atol=1e-5, rtol=1e-5), "mismatch vs reference (single block)"

    # Small byte budget to exercise the pipelined multi-step grid over M (M_p=32, tm=8 -> 4 steps).
    out_tiled = jax.block_until_ready(attention_forward(x, attention, block_bytes=8 * 1024))
    assert jnp.allclose(out_tiled, ref, atol=1e-5, rtol=1e-5), "mismatch vs reference (tiled)"

    # Odd-sized M to exercise the ragged-tail path (M_p=45, tm=16 -> 3 steps, masked tail).
    S1b, S2b = 20, 9
    xb = jax.random.normal(jax.random.PRNGKey(1), (B, S1b, S2b, H), dtype=jnp.float32)
    ref_b = _reference(xb, attention)
    out_b = jax.block_until_ready(attention_forward(xb, attention, block_bytes=16 * 1024))
    assert out_b.shape == (S1b, S2b, H)
    assert jnp.allclose(out_b, ref_b, atol=1e-5, rtol=1e-5), "mismatch vs reference (ragged tail)"

    print("KERNEL_OK")
</pallas_src>

<mosaic_0001>
module attributes {stable_mosaic.version = 11 : i64} {
  func.func @_attention_kernel(%arg0: i32, %arg1: memref<2x32x128xf32, #tpu.memory_space<vmem>>, %arg2: memref<128x4xf32, #tpu.memory_space<vmem>>, %arg3: memref<4x128xf32, #tpu.memory_space<vmem>>, %arg4: memref<32x128xf32, #tpu.memory_space<vmem>>) attributes {dimension_semantics = [#tpu.dimension_semantics<parallel>], iteration_bounds = array<i64: 1>, scalar_prefetch = 0 : i64, scratch_operands = 0 : i64, tpu.core_type = #tpu.core_type<tc>, window_params = [{transform_indices = @transform_0, window_bounds = array<i64: 2, 32, 128>}, {pipeline_mode = #tpu.pipeline_mode<synchronous>, transform_indices = @transform_1, window_bounds = array<i64: 128, 4>}, {pipeline_mode = #tpu.pipeline_mode<synchronous>, transform_indices = @transform_2, window_bounds = array<i64: 4, 128>}, {transform_indices = @transform_3, window_bounds = array<i64: 32, 128>}]} {
    %c0 = arith.constant 0 : index
    %c0_0 = arith.constant 0 : index
    %c0_1 = arith.constant 0 : index
    %0 = vector.load %arg1[%c0, %c0_0, %c0_1] : memref<2x32x128xf32, #tpu.memory_space<vmem>>, vector<2x32x128xf32>
    %c0_2 = arith.constant 0 : index
    %c0_3 = arith.constant 0 : index
    %1 = vector.load %arg2[%c0_2, %c0_3] : memref<128x4xf32, #tpu.memory_space<vmem>>, vector<128x4xf32>
    %c0_4 = arith.constant 0 : index
    %c0_5 = arith.constant 0 : index
    %2 = vector.load %arg3[%c0_4, %c0_5] : memref<4x128xf32, #tpu.memory_space<vmem>>, vector<4x128xf32>
    %3 = vector.shape_cast %0 : vector<2x32x128xf32> to vector<64x128xf32>
    %cst = arith.constant dense<0.000000e+00> : vector<64x4xf32>
    %4 = tpu.matmul %3, %1, %cst {dimension_numbers = #tpu.dot_dimension_numbers<[1], [0], [0], [1], [0, 0, 1, 1], [], []>} : vector<64x128xf32>, vector<128x4xf32>, vector<64x4xf32> -> vector<64x4xf32>
    %5 = vector.shape_cast %4 : vector<64x4xf32> to vector<2x32x4xf32>
    %cst_6 = arith.constant dense<0xFF800000> : vector<32x4xf32>
    %6 = vector.multi_reduction <maximumf>, %5, %cst_6 [0] : vector<2x32x4xf32> to vector<32x4xf32>
    %7 = vector.shape_cast %6 : vector<32x4xf32> to vector<1x32x4xf32>
    %8 = vector.broadcast %7 : vector<1x32x4xf32> to vector<2x32x4xf32>
    %9 = arith.subf %5, %8 : vector<2x32x4xf32>
    %10 = math.exp %9 : vector<2x32x4xf32>
    %cst_7 = arith.constant dense<0.000000e+00> : vector<32x4xf32>
    %11 = vector.multi_reduction <add>, %10, %cst_7 [0] : vector<2x32x4xf32> to vector<32x4xf32>
    %12 = vector.shape_cast %11 : vector<32x4xf32> to vector<1x32x4xf32>
    %13 = vector.broadcast %12 : vector<1x32x4xf32> to vector<2x32x4xf32>
    %14 = arith.divf %10, %13 : vector<2x32x4xf32>
    %15 = vector.shape_cast %14 : vector<2x32x4xf32> to vector<64x4xf32>
    %cst_8 = arith.constant dense<0.000000e+00> : vector<64x128xf32>
    %16 = tpu.matmul %15, %2, %cst_8 {dimension_numbers = #tpu.dot_dimension_numbers<[1], [0], [0], [1], [0, 0, 1, 1], [], []>} : vector<64x4xf32>, vector<4x128xf32>, vector<64x128xf32> -> vector<64x128xf32>
    %17 = vector.shape_cast %16 : vector<64x128xf32> to vector<2x32x128xf32>
    %18 = arith.mulf %0, %17 : vector<2x32x128xf32>
    %cst_9 = arith.constant dense<0.000000e+00> : vector<32x128xf32>
    %19 = vector.multi_reduction <add>, %18, %cst_9 [0] : vector<2x32x128xf32> to vector<32x128xf32>
    %c0_10 = arith.constant 0 : index
    %c0_11 = arith.constant 0 : index
    %20 = vector.load %arg4[%c0_10, %c0_11] : memref<32x128xf32, #tpu.memory_space<vmem>>, vector<32x128xf32>
    tpu.vector_store %arg4[%c0_10, %c0_11], %19 {strides = array<i32>} : memref<32x128xf32, #tpu.memory_space<vmem>>, vector<32x128xf32>,
    return
  }
  func.func @transform_0(%arg0: i32) -> (i32, i32, i32) {
    %c0_i32 = arith.constant 0 : i32
    %c0_i32_0 = arith.constant 0 : i32
    %c0_i32_1 = arith.constant 0 : i32
    return %c0_i32, %arg0, %c0_i32_0 : i32, i32, i32
  }
  func.func @transform_1(%arg0: i32) -> (i32, i32) {
    %c0_i32 = arith.constant 0 : i32
    %c0_i32_0 = arith.constant 0 : i32
    %c0_i32_1 = arith.constant 0 : i32
    return %c0_i32, %c0_i32_0 : i32, i32
  }
  func.func @transform_2(%arg0: i32) -> (i32, i32) {
    %c0_i32 = arith.constant 0 : i32
    %c0_i32_0 = arith.constant 0 : i32
    %c0_i32_1 = arith.constant 0 : i32
    return %c0_i32, %c0_i32_0 : i32, i32
  }
  func.func @transform_3(%arg0: i32) -> (i32, i32) {
    %c0_i32 = arith.constant 0 : i32
    %c0_i32_0 = arith.constant 0 : i32
    return %arg0, %c0_i32 : i32, i32
  }
}

</mosaic_0001>

<llo_original>
// kernel: tpu_custom_call.1
$region0: #{tpu_custom_call.1}
  #allocation0 [shape = 'u32[]', space=smem, size = 0x4, offset = 0x4, fixed_abs, tag = 'smem constant byte address 0x4 - core index']
  #allocation1 [shape = 'u32[144,128]{1,0:T(1,128)}', space=vmem, size = 0x12000, scoped, tag = 'internal scratch']
  %s0 = inlined_call_operand.vmem [shape: f32[2,32,128], index: 0, kind: input, shape index: {}]
  %s1 = inlined_call_operand.vmem [shape: f32[128,4], index: 1, kind: input, shape index: {}]
  %s2 = inlined_call_operand.vmem [shape: f32[4,128], index: 2, kind: input, shape index: {}]
  %s3 = inlined_call_operand.hbm [shape: f32[32,128], index: 3, kind: output, shape index: {}]
  %s4 = sld [smem:[#allocation0]]
  $region22: #{tpu_custom_call.1} parent=0
    _
  %s6 = ssub.s32 1, %s4
  %s7 = scalar_select 0, %s6, %s4
  $region1: #{tpu_custom_call.1} parent=0
    #allocation2 [shape = 'u8[16384]{0}', space=vmem, size = 0x4000, scoped, tag = 'output window, operand 0, single buffered']
    #allocation3 [shape = 's32[1]{0}', space=sflag, size = 0x4, scoped, tag = 'scoped memory for tpu_custom_call.1']
    %8 = vsyncpa [#allocation3], 0
    // Predicated region
    $region2: #{tpu_custom_call.1} parent=1 // pred_check
      _
    $region3: #{tpu_custom_call.1} parent=1 // pred_check_branch
      %10 = sbr.rel (0) target = $region5
    $region4: #{tpu_custom_call.1} parent=1 // pred_region
      _
    $region5: #{tpu_custom_call.1} parent=1 // pred_fallthru
      _
    // Predicated region
    $region6: #{tpu_custom_call.1} parent=1 // pred_check
      _
    $region7: #{tpu_custom_call.1} parent=1 // pred_check_branch
      %12 = sbr.rel (0) target = $region9
    $region8: #{tpu_custom_call.1} parent=1 // pred_region
      _
    $region9: #{tpu_custom_call.1} parent=1 // pred_fallthru
      _
    // Predicated region
    $region10: #{tpu_custom_call.1} parent=1 // pred_check
      _
    $region11: #{tpu_custom_call.1} parent=1 // pred_check_branch
      %14 = sbr.rel (0) target = $region13
    $region12: #{tpu_custom_call.1} parent=1 // pred_region
      _
    $region13: #{tpu_custom_call.1} parent=1 // pred_fallthru
      _
    %v15 = vld [vmem:[%s0] sm:$0xff]
    %v16 = vld [vmem:[%s0 + $0x8] sm:$0xff]
    %v17 = vld [vmem:[%s0 + $0x10] sm:$0xff]
    %v18 = vld [vmem:[%s0 + $0x18] sm:$0xff]
    %v19 = vld [vmem:[%s0 + $0x20] sm:$0xff]
    %v20 = vld [vmem:[%s0 + $0x28] sm:$0xff]
    %v21 = vld [vmem:[%s0 + $0x30] sm:$0xff]
    %v22 = vld [vmem:[%s0 + $0x38] sm:$0xff]
    %v23 = vld [vmem:[%s1] sm:$0xff]
    %v24 = vld [vmem:[%s1 + $0x8] sm:$0xff]
    %v25 = vld [vmem:[%s1 + $0x10] sm:$0xff]
    %v26 = vld [vmem:[%s1 + $0x18] sm:$0xff]
    %v27 = vld [vmem:[%s1 + $0x20] sm:$0xff]
    %v28 = vld [vmem:[%s1 + $0x28] sm:$0xff]
    %v29 = vld [vmem:[%s1 + $0x30] sm:$0xff]
    %v30 = vld [vmem:[%s1 + $0x38] sm:$0xff]
    %v31 = vld [vmem:[%s1 + $0x40] sm:$0xff]
    %v32 = vld [vmem:[%s1 + $0x48] sm:$0xff]
    %v33 = vld [vmem:[%s1 + $0x50] sm:$0xff]
    %v34 = vld [vmem:[%s1 + $0x58] sm:$0xff]
    %v35 = vld [vmem:[%s1 + $0x60] sm:$0xff]
    %v36 = vld [vmem:[%s1 + $0x68] sm:$0xff]
    %v37 = vld [vmem:[%s1 + $0x70] sm:$0xff]
    %v38 = vld [vmem:[%s1 + $0x78] sm:$0xff]
    %v39 = vld [vmem:[%s2] sm:$0xf]
    %40 = vmatprep.subr.mxu0 0.0
    %41 = vmatpush1.msra.mxu0 %v38
    %42 = vmatprep.subr.mxu0 0.0
    %43 = vmatpush1.msra.mxu0 %v37
    %44 = vmatprep.subr.mxu0 0.0
    %45 = vmatpush1.msra.mxu0 %v36
    %46 = vmatprep.subr.mxu0 0.0
    %47 = vmatpush1.msra.mxu0 %v35
    %48 = vmatprep.subr.mxu0 0.0
    %49 = vmatpush1.msra.mxu0 %v34
    %50 = vmatprep.subr.mxu0 0.0
    %51 = vmatpush1.msra.mxu0 %v33
    %52 = vmatprep.subr.mxu0 0.0
    %53 = vmatpush1.msra.mxu0 %v32
    %54 = vmatprep.subr.mxu0 0.0
    %55 = vmatpush1.msra.mxu0 %v31
    %56 = vmatprep.subr.mxu0 0.0
    %57 = vmatpush1.msra.mxu0 %v30
    %58 = vmatprep.subr.mxu0 0.0
    %59 = vmatpush1.msra.mxu0 %v29
    %60 = vmatprep.subr.mxu0 0.0
    %61 = vmatpush1.msra.mxu0 %v28
    %62 = vmatprep.subr.mxu0 0.0
    %63 = vmatpush1.msra.mxu0 %v27
    %64 = vmatprep.subr.mxu0 0.0
    %65 = vmatpush1.msra.mxu0 %v26
    %66 = vmatprep.subr.mxu0 0.0
    %67 = vmatpush1.msra.mxu0 %v25
    %68 = vmatprep.subr.mxu0 0.0
    %69 = vmatpush1.msra.mxu0 %v24
    %70 = vmatprep.subr.mxu0 0.0
    %71 = vmatpush1.msra.mxu0 %v23
    %72 = vmatprep.subr.mxu0 0.0
    %73 = vmatpush2.msra.mxu0 0.0
    %74 = vmatprep.subr.mxu0 0.0
    %75 = vmatpush2.msra.mxu0 0.0
    %76 = vmatprep.subr.mxu0 0.0
    %77 = vmatpush2.msra.mxu0 0.0
    %78 = vmatprep.subr.mxu0 0.0
    %79 = vmatpush2.msra.mxu0 0.0
    %80 = vmatprep.subr.mxu0 0.0
    %81 = vmatpush2.msra.mxu0 0.0
    %82 = vmatprep.subr.mxu0 0.0
    %83 = vmatpush2.msra.mxu0 0.0
    %84 = vmatprep.subr.mxu0 0.0
    %85 = vmatpush2.msra.mxu0 0.0
    %86 = vmatprep.subr.mxu0 0.0
    %87 = vmatpush2.msra.mxu0 0.0
    %88 = vmatprep.subr.mxu0 0.0
    %89 = vmatpush2.msra.mxu0 0.0
    %90 = vmatprep.subr.mxu0 0.0
    %91 = vmatpush2.msra.mxu0 0.0
    %92 = vmatprep.subr.mxu0 0.0
    %93 = vmatpush2.msra.mxu0 0.0
    %94 = vmatprep.subr.mxu0 0.0
    %95 = vmatpush2.msra.mxu0 0.0
    %96 = vmatprep.subr.mxu0 0.0
    %97 = vmatpush2.msra.mxu0 0.0
    %98 = vmatprep.subr.mxu0 0.0
    %99 = vmatpush2.msra.mxu0 0.0
    %100 = vmatprep.subr.mxu0 0.0
    %101 = vmatpush2.msra.mxu0 0.0
    %102 = vmatprep.subr.mxu0 0.0
    %103 = vmatpush2.msra.mxu0 0.0
    %104 = vmatprep.mubr.f32.mxu0 0.0
    %105 = vmatmul.mubr.f32.gmra.mxu0 %v15
    %v106 = vpop.f32.mrf.mxu0
    %v107 = vadd.f32 0.0, %v106
    %v108 = vpop.f32.mrf.mxu0
    %109 = vmatprep.mubr.f32.mxu0 0.0
    %110 = vmatmul.mubr.f32.gmra.mxu0 %v16
    %v111 = vpop.f32.mrf.mxu0
    %v112 = vadd.f32 0.0, %v111
    %v113 = vpop.f32.mrf.mxu0
    %114 = vmatprep.mubr.f32.mxu0 0.0
    %115 = vmatmul.mubr.f32.gmra.mxu0 %v17
    %v116 = vpop.f32.mrf.mxu0
    %v117 = vadd.f32 0.0, %v116
    %v118 = vpop.f32.mrf.mxu0
    %119 = vmatprep.mubr.f32.mxu0 0.0
    %120 = vmatmul.mubr.f32.gmra.mxu0 %v18
    %v121 = vpop.f32.mrf.mxu0
    %v122 = vadd.f32 0.0, %v121
    %v123 = vpop.f32.mrf.mxu0
    %124 = vmatprep.mubr.f32.mxu0 0.0
    %125 = vmatmul.mubr.f32.gmra.mxu0 %v19
    %v126 = vpop.f32.mrf.mxu0
    %v127 = vadd.f32 0.0, %v126
    %v128 = vpop.f32.mrf.mxu0
    %129 = vmatprep.mubr.f32.mxu0 0.0
    %130 = vmatmul.mubr.f32.gmra.mxu0 %v20
    %v131 = vpop.f32.mrf.mxu0
    %v132 = vadd.f32 0.0, %v131
    %v133 = vpop.f32.mrf.mxu0
    %134 = vmatprep.mubr.f32.mxu0 0.0
    %135 = vmatmul.mubr.f32.gmra.mxu0 %v21
    %v136 = vpop.f32.mrf.mxu0
    %v137 = vadd.f32 0.0, %v136
    %v138 = vpop.f32.mrf.mxu0
    %139 = vmatprep.mubr.f32.mxu0 0.0
    %140 = vmatmul.mubr.f32.gmra.mxu0 %v22
    %v141 = vpop.f32.mrf.mxu0
    %v142 = vadd.f32 0.0, %v141
    %v143 = vpop.f32.mrf.mxu0
    %144 = vdwg.mxu0
    %vm145 = vcmask 31744
    %v146 = vsel %vm145, %v107, -inf
    %v147 = vsel %vm145, %v127, -inf
    %v148 = vmax.f32 %v146, %v147
    %v149 = vsel %vm145, %v112, -inf
    %v150 = vsel %vm145, %v132, -inf
    %v151 = vmax.f32 %v149, %v150
    %v152 = vsel %vm145, %v117, -inf
    %v153 = vsel %vm145, %v137, -inf
    %v154 = vmax.f32 %v152, %v153
    %v155 = vsel %vm145, %v122, -inf
    %v156 = vsel %vm145, %v142, -inf
    %v157 = vmax.f32 %v155, %v156
    %v158 = vsub.f32 %v107, %v148
    %v159 = vsub.f32 %v112, %v151
    %v160 = vsub.f32 %v117, %v154
    %v161 = vsub.f32 %v122, %v157
    %v162 = vsub.f32 %v127, %v148
    %v163 = vsub.f32 %v132, %v151
    %v164 = vsub.f32 %v137, %v154
    %v165 = vsub.f32 %v142, %v157
    %v166 = vmul.f32 %v158, 1.442695
    %v167 = vpow.pop %v166
    %v168 = vmul.f32 %v159, 1.442695
    %v169 = vpow.pop %v168
    %v170 = vmul.f32 %v160, 1.442695
    %v171 = vpow.pop %v170
    %v172 = vmul.f32 %v161, 1.442695
    %v173 = vpow.pop %v172
    %v174 = vmul.f32 %v162, 1.442695
    %v175 = vpow.pop %v174
    %v176 = vmul.f32 %v163, 1.442695
    %v177 = vpow.pop %v176
    %v178 = vmul.f32 %v164, 1.442695
    %v179 = vpow.pop %v178
    %v180 = vmul.f32 %v165, 1.442695
    %v181 = vpow.pop %v180
    %v182 = vsel %vm145, %v167, 0.0
    %v183 = vsel %vm145, %v175, 0.0
    %v184 = vadd.f32 %v182, %v183
    %v185 = vsel %vm145, %v169, 0.0
    %v186 = vsel %vm145, %v177, 0.0
    %v187 = vadd.f32 %v185, %v186
    %v188 = vsel %vm145, %v171, 0.0
    %v189 = vsel %vm145, %v179, 0.0
    %v190 = vadd.f32 %v188, %v189
    %v191 = vsel %vm145, %v173, 0.0
    %v192 = vsel %vm145, %v181, 0.0
    %v193 = vadd.f32 %v191, %v192
    %v194 = vrcp.pop %v184
    %v195 = vmul.f32 %v167, %v194
    %v196 = vrcp.pop %v187
    %v197 = vmul.f32 %v169, %v196
    %v198 = vrcp.pop %v190
    %v199 = vmul.f32 %v171, %v198
    %v200 = vrcp.pop %v193
    %v201 = vmul.f32 %v173, %v200
    %v202 = vmul.f32 %v175, %v194
    %v203 = vmul.f32 %v177, %v196
    %v204 = vmul.f32 %v179, %v198
    %v205 = vmul.f32 %v181, %v200
    %v207 = vsel %vm145, %v195, 0
    %v210 = vsel %vm145, %v197, 0
    %v213 = vsel %vm145, %v199, 0
    %v216 = vsel %vm145, %v201, 0
    %v219 = vsel %vm145, %v202, 0
    %v222 = vsel %vm145, %v203, 0
    %v225 = vsel %vm145, %v204, 0
    %v228 = vsel %vm145, %v205, 0
    %vm230 = vcmask 1043456
    %v232 = vsel %vm230, %v39, 0
    %234 = vmatprep.subr.mxu0 0.0
    %235 = vmatpush1.msra.mxu0 0.0
    %236 = vmatprep.subr.mxu0 0.0
    %237 = vmatpush1.msra.mxu0 0.0
    %238 = vmatprep.subr.mxu0 0.0
    %239 = vmatpush1.msra.mxu0 0.0
    %240 = vmatprep.subr.mxu0 0.0
    %241 = vmatpush1.msra.mxu0 0.0
    %242 = vmatprep.subr.mxu0 0.0
    %243 = vmatpush1.msra.mxu0 0.0
    %244 = vmatprep.subr.mxu0 0.0
    %245 = vmatpush1.msra.mxu0 0.0
    %246 = vmatprep.subr.mxu0 0.0
    %247 = vmatpush1.msra.mxu0 0.0
    %248 = vmatprep.subr.mxu0 0.0
    %249 = vmatpush1.msra.mxu0 0.0
    %250 = vmatprep.subr.mxu0 0.0
    %251 = vmatpush1.msra.mxu0 0.0
    %252 = vmatprep.subr.mxu0 0.0
    %253 = vmatpush1.msra.mxu0 0.0
    %254 = vmatprep.subr.mxu0 0.0
    %255 = vmatpush1.msra.mxu0 0.0
    %256 = vmatprep.subr.mxu0 0.0
    %257 = vmatpush1.msra.mxu0 0.0
    %258 = vmatprep.subr.mxu0 0.0
    %259 = vmatpush1.msra.mxu0 0.0
    %260 = vmatprep.subr.mxu0 0.0
    %261 = vmatpush1.msra.mxu0 0.0
    %262 = vmatprep.subr.mxu0 0.0
    %263 = vmatpush1.msra.mxu0 0.0
    %264 = vmatprep.subr.mxu0 0.0
    %265 = vmatpush1.msra.mxu0 %v232
    %266 = vmatprep.subr.mxu0 0.0
    %267 = vmatpush2.msra.mxu0 0.0
    %268 = vmatprep.subr.mxu0 0.0
    %269 = vmatpush2.msra.mxu0 0.0
    %270 = vmatprep.subr.mxu0 0.0
    %271 = vmatpush2.msra.mxu0 0.0
    %272 = vmatprep.subr.mxu0 0.0
    %273 = vmatpush2.msra.mxu0 0.0
    %274 = vmatprep.subr.mxu0 0.0
    %275 = vmatpush2.msra.mxu0 0.0
    %276 = vmatprep.subr.mxu0 0.0
    %277 = vmatpush2.msra.mxu0 0.0
    %278 = vmatprep.subr.mxu0 0.0
    %279 = vmatpush2.msra.mxu0 0.0
    %280 = vmatprep.subr.mxu0 0.0
    %281 = vmatpush2.msra.mxu0 0.0
    %282 = vmatprep.subr.mxu0 0.0
    %283 = vmatpush2.msra.mxu0 0.0
    %284 = vmatprep.subr.mxu0 0.0
    %285 = vmatpush2.msra.mxu0 0.0
    %286 = vmatprep.subr.mxu0 0.0
    %287 = vmatpush2.msra.mxu0 0.0
    %288 = vmatprep.subr.mxu0 0.0
    %289 = vmatpush2.msra.mxu0 0.0
    %290 = vmatprep.subr.mxu0 0.0
    %291 = vmatpush2.msra.mxu0 0.0
    %292 = vmatprep.subr.mxu0 0.0
    %293 = vmatpush2.msra.mxu0 0.0
    %294 = vmatprep.subr.mxu0 0.0
    %295 = vmatpush2.msra.mxu0 0.0
    %296 = vmatprep.subr.mxu0 0.0
    %297 = vmatpush2.msra.mxu0 0.0
    %298 = vmatprep.mubr.f32.mxu0 0.0
    %299 = vmatmul.mubr.f32.gmra.mxu0 %v207
    %v300 = vpop.f32.mrf.mxu0
    %v301 = vadd.f32 0.0, %v300
    %v302 = vpop.f32.mrf.mxu0
    %303 = vmatprep.mubr.f32.mxu0 0.0
    %304 = vmatmul.mubr.f32.gmra.mxu0 %v210
    %v305 = vpop.f32.mrf.mxu0
    %v306 = vadd.f32 0.0, %v305
    %v307 = vpop.f32.mrf.mxu0
    %308 = vmatprep.mubr.f32.mxu0 0.0
    %309 = vmatmul.mubr.f32.gmra.mxu0 %v213
    %v310 = vpop.f32.mrf.mxu0
    %v311 = vadd.f32 0.0, %v310
    %v312 = vpop.f32.mrf.mxu0
    %313 = vmatprep.mubr.f32.mxu0 0.0
    %314 = vmatmul.mubr.f32.gmra.mxu0 %v216
    %v315 = vpop.f32.mrf.mxu0
    %v316 = vadd.f32 0.0, %v315
    %v317 = vpop.f32.mrf.mxu0
    %318 = vmatprep.mubr.f32.mxu0 0.0
    %319 = vmatmul.mubr.f32.gmra.mxu0 %v219
    %v320 = vpop.f32.mrf.mxu0
    %v321 = vadd.f32 0.0, %v320
    %v322 = vpop.f32.mrf.mxu0
    %323 = vmatprep.mubr.f32.mxu0 0.0
    %324 = vmatmul.mubr.f32.gmra.mxu0 %v222
    %v325 = vpop.f32.mrf.mxu0
    %v326 = vadd.f32 0.0, %v325
    %v327 = vpop.f32.mrf.mxu0
    %328 = vmatprep.mubr.f32.mxu0 0.0
    %329 = vmatmul.mubr.f32.gmra.mxu0 %v225
    %v330 = vpop.f32.mrf.mxu0
    %v331 = vadd.f32 0.0, %v330
    %v332 = vpop.f32.mrf.mxu0
    %333 = vmatprep.mubr.f32.mxu0 0.0
    %334 = vmatmul.mubr.f32.gmra.mxu0 %v228
    %v335 = vpop.f32.mrf.mxu0
    %v336 = vadd.f32 0.0, %v335
    %v337 = vpop.f32.mrf.mxu0
    %338 = vdwg.mxu0
    %v339 = vmul.f32 %v15, %v301
    %v340 = vmul.f32 %v16, %v306
    %v341 = vmul.f32 %v17, %v311
    %v342 = vmul.f32 %v18, %v316
    %v343 = vmul.f32 %v19, %v321
    %v344 = vmul.f32 %v20, %v326
    %v345 = vmul.f32 %v21, %v331
    %v346 = vmul.f32 %v22, %v336
    %v347 = vadd.f32 %v339, %v343
    %v348 = vadd.f32 %v340, %v344
    %v349 = vadd.f32 %v341, %v345
    %v350 = vadd.f32 %v342, %v346
    %351 = vst [vmem:[#allocation2] sm:$0xff] %v347
    %352 = vst [vmem:[#allocation2 + $0x8] sm:$0xff] %v348
    %353 = vst [vmem:[#allocation2 + $0x10] sm:$0xff] %v349
    %354 = vst [vmem:[#allocation2 + $0x18] sm:$0xff] %v350
    // Predicated region
    $region14: #{tpu_custom_call.1} parent=1 // pred_check
      _
    $region15: #{tpu_custom_call.1} parent=1 // pred_check_branch
      %356 = sbr.rel (0) target = $region17
    $region16: #{tpu_custom_call.1} parent=1 // pred_region
      %s358 = ssub.s32 512, 512
      %359 = vsyncadd [#allocation3], %s358
      %s360 = sshll.u32 [#allocation2], 4
      %s361 = int_to_ptr.vmem [resolvable:$true] %s360
      %366 = dma.vmem_to_hbm [thread:$0]  %s361, 512, %s3, [#allocation3], 128, 128, 8
    $region17: #{tpu_custom_call.1} parent=1 // pred_fallthru
      _
    // Predicated region
    $region18: #{tpu_custom_call.1} parent=1 // pred_check
      _
    $region19: #{tpu_custom_call.1} parent=1 // pred_check_branch
      %368 = sbr.rel (0) target = $region21
    $region20: #{tpu_custom_call.1} parent=1 // pred_region
      %369 = dma.done [#allocation3], 512
    $region21: #{tpu_custom_call.1} parent=1 // pred_fallthru
      _
    %370 = vsyncpa [#allocation3], 1

</llo_original>
